<compile_context>
chip_gen: v5e
topology: v5e:2x2
jax: 0.10.0
libtpu: 0.0.40
codegen_flags: <defaults>
</compile_context>

<pallas_src>
import jax
import jax.numpy as jnp
import numpy as np
from jax import lax
from jax.experimental import pallas as pl
from jax.experimental.pallas import tpu as pltpu


def _edge_loss_kernel(xp_ref, tp_ref, g1_ref, g2_ref, part_ref):
    """One grid step == one image.

    xp_ref/tp_ref : (1, H+2, W+2) zero-padded `out` / `target` image (VMEM)
    g1_ref/g2_ref : (1, H, W) gradient-magnitude outputs
    part_ref      : (1, 1, W) per-sample partial sum over H of (g1 - g2)^2
    """
    H = g1_ref.shape[1]
    W = g1_ref.shape[2]

    def grad_mag(ref):
        img = ref[0]                                   # (H+2, W+2), single VMEM load

        def tap(kh, kw):                               # shifted (H, W) window (static slice)
            return lax.slice(img, (kh, kw), (kh + H, kw + W))

        # Sobel-x: [[1,0,-1],[2,0,-2],[1,0,-1]]  (cross-correlation, like F.conv2d)
        gx = (tap(0, 0) - tap(0, 2)
              + 2.0 * tap(1, 0) - 2.0 * tap(1, 2)
              + tap(2, 0) - tap(2, 2))
        # Sobel-y: [[1,2,1],[0,0,0],[-1,-2,-1]]
        gy = (tap(0, 0) + 2.0 * tap(0, 1) + tap(0, 2)
              - tap(2, 0) - 2.0 * tap(2, 1) - tap(2, 2))
        return jnp.sqrt(gx * gx + gy * gy)

    g1 = grad_mag(xp_ref)
    g2 = grad_mag(tp_ref)
    g1_ref[0] = g1
    g2_ref[0] = g2

    d = g1 - g2
    part_ref[0] = jnp.sum(d * d, axis=0, keepdims=True)   # (1, W) partial SSD


def edge_loss(out, target):
    """Pallas equivalent of EdgeLoss.forward(out, target).

    out/target: (N, 1, H, W). Returns (mean((g1-g2)^2), g1, g2) with g1/g2
    shaped (N, 1, H, W), matching the PyTorch module.
    """
    N, C, H, W = out.shape
    assert C == 1, "EdgeLoss Sobel weights are (1, 1, 3, 3): single channel only"

    x = out.reshape(N, H, W).astype(jnp.float32)
    t = target.reshape(N, H, W).astype(jnp.float32)
    # padding=1 halo (the only pre-kernel data movement; everything else is fused).
    xp = jnp.pad(x, ((0, 0), (1, 1), (1, 1)))
    tp = jnp.pad(t, ((0, 0), (1, 1), (1, 1)))

    g1, g2, partial = pl.pallas_call(
        _edge_loss_kernel,
        out_shape=(
            jax.ShapeDtypeStruct((N, H, W), jnp.float32),
            jax.ShapeDtypeStruct((N, H, W), jnp.float32),
            jax.ShapeDtypeStruct((N, 1, W), jnp.float32),
        ),
        grid_spec=pltpu.PrefetchScalarGridSpec(
            num_scalar_prefetch=0,
            grid=(N,),
            in_specs=[
                pl.BlockSpec((1, H + 2, W + 2), lambda n: (n, 0, 0)),
                pl.BlockSpec((1, H + 2, W + 2), lambda n: (n, 0, 0)),
            ],
            out_specs=[
                pl.BlockSpec((1, H, W), lambda n: (n, 0, 0)),
                pl.BlockSpec((1, H, W), lambda n: (n, 0, 0)),
                pl.BlockSpec((1, 1, W), lambda n: (n, 0, 0)),
            ],
        ),
        compiler_params=pltpu.CompilerParams(
            dimension_semantics=("parallel",)),
    )(xp, tp)

    # Tiny (N*W)-element tail of the reduction + mean left to XLA.
    loss = jnp.sum(partial) / (N * C * H * W)
    return loss, g1.reshape(N, C, H, W), g2.reshape(N, C, H, W)


def _edge_loss_reference(out, target):
    """Independent reference via lax.conv (cross-correlation, like F.conv2d)."""
    wx = jnp.array([[1., 0., -1.], [2., 0., -2.], [1., 0., -1.]],
                   jnp.float32).reshape(1, 1, 3, 3)
    wy = jnp.array([[1., 2., 1.], [0., 0., 0.], [-1., -2., -1.]],
                   jnp.float32).reshape(1, 1, 3, 3)

    def conv(x, w):
        return lax.conv_general_dilated(
            x, w, window_strides=(1, 1), padding=((1, 1), (1, 1)),
            dimension_numbers=("NCHW", "OIHW", "NCHW"),
            precision=lax.Precision.HIGHEST)

    g1 = jnp.sqrt(conv(out, wx) ** 2 + conv(out, wy) ** 2)
    g2 = jnp.sqrt(conv(target, wx) ** 2 + conv(target, wy) ** 2)
    return jnp.mean((g1 - g2) ** 2), g1, g2


if __name__ == "__main__":
    batch, channels, H, W = 2, 1, 16, 16
    key = jax.random.PRNGKey(0)
    k1, k2 = jax.random.split(key)
    out_img = jax.random.normal(k1, (batch, channels, H, W), dtype=jnp.float32)
    target_img = jax.random.normal(k2, (batch, channels, H, W), dtype=jnp.float32)

    loss, g1, g2 = edge_loss(out_img, target_img)
    loss, g1, g2 = jax.block_until_ready((loss, g1, g2))

    assert loss.shape == ()
    assert g1.shape == (batch, channels, H, W)
    assert g2.shape == (batch, channels, H, W)

    r_loss, r_g1, r_g2 = _edge_loss_reference(out_img, target_img)
    np.testing.assert_allclose(np.asarray(g1), np.asarray(r_g1), rtol=1e-4, atol=1e-4)
    np.testing.assert_allclose(np.asarray(g2), np.asarray(r_g2), rtol=1e-4, atol=1e-4)
    np.testing.assert_allclose(np.asarray(loss), np.asarray(r_loss), rtol=1e-4, atol=1e-4)

    print("KERNEL_OK")
</pallas_src>

<mosaic_0001>
module attributes {stable_mosaic.version = 11 : i64} {
  func.func @_edge_loss_kernel(%arg0: i32, %arg1: memref<1x18x18xf32, #tpu.memory_space<vmem>>, %arg2: memref<1x18x18xf32, #tpu.memory_space<vmem>>, %arg3: memref<1x16x16xf32, #tpu.memory_space<vmem>>, %arg4: memref<1x16x16xf32, #tpu.memory_space<vmem>>, %arg5: memref<1x1x16xf32, #tpu.memory_space<vmem>>) attributes {dimension_semantics = [#tpu.dimension_semantics<parallel>], iteration_bounds = array<i64: 2>, scalar_prefetch = 0 : i64, scratch_operands = 0 : i64, tpu.core_type = #tpu.core_type<tc>, window_params = [{transform_indices = @transform_0, window_bounds = array<i64: 1, 18, 18>}, {transform_indices = @transform_1, window_bounds = array<i64: 1, 18, 18>}, {transform_indices = @transform_2, window_bounds = array<i64: 1, 16, 16>}, {transform_indices = @transform_3, window_bounds = array<i64: 1, 16, 16>}, {transform_indices = @transform_4, window_bounds = array<i64: 1, 1, 16>}]} {
    %c0 = arith.constant 0 : index
    %c0_0 = arith.constant 0 : index
    %c0_1 = arith.constant 0 : index
    %0 = vector.load %arg1[%c0, %c0_0, %c0_1] : memref<1x18x18xf32, #tpu.memory_space<vmem>>, vector<1x18x18xf32>
    %1 = vector.shape_cast %0 : vector<1x18x18xf32> to vector<18x18xf32>
    %2 = vector.extract_strided_slice %1 {offsets = [0, 0], sizes = [16, 16], strides = [1, 1]} : vector<18x18xf32> to vector<16x16xf32>
    %3 = vector.extract_strided_slice %1 {offsets = [0, 2], sizes = [16, 16], strides = [1, 1]} : vector<18x18xf32> to vector<16x16xf32>
    %4 = arith.subf %2, %3 : vector<16x16xf32>
    %5 = vector.extract_strided_slice %1 {offsets = [1, 0], sizes = [16, 16], strides = [1, 1]} : vector<18x18xf32> to vector<16x16xf32>
    %cst = arith.constant 2.000000e+00 : f32
    %6 = vector.broadcast %cst : f32 to vector<16x16xf32>
    %7 = arith.mulf %6, %5 : vector<16x16xf32>
    %8 = arith.addf %4, %7 : vector<16x16xf32>
    %9 = vector.extract_strided_slice %1 {offsets = [1, 2], sizes = [16, 16], strides = [1, 1]} : vector<18x18xf32> to vector<16x16xf32>
    %cst_2 = arith.constant 2.000000e+00 : f32
    %10 = vector.broadcast %cst_2 : f32 to vector<16x16xf32>
    %11 = arith.mulf %10, %9 : vector<16x16xf32>
    %12 = arith.subf %8, %11 : vector<16x16xf32>
    %13 = vector.extract_strided_slice %1 {offsets = [2, 0], sizes = [16, 16], strides = [1, 1]} : vector<18x18xf32> to vector<16x16xf32>
    %14 = arith.addf %12, %13 : vector<16x16xf32>
    %15 = vector.extract_strided_slice %1 {offsets = [2, 2], sizes = [16, 16], strides = [1, 1]} : vector<18x18xf32> to vector<16x16xf32>
    %16 = arith.subf %14, %15 : vector<16x16xf32>
    %17 = vector.extract_strided_slice %1 {offsets = [0, 0], sizes = [16, 16], strides = [1, 1]} : vector<18x18xf32> to vector<16x16xf32>
    %18 = vector.extract_strided_slice %1 {offsets = [0, 1], sizes = [16, 16], strides = [1, 1]} : vector<18x18xf32> to vector<16x16xf32>
    %cst_3 = arith.constant 2.000000e+00 : f32
    %19 = vector.broadcast %cst_3 : f32 to vector<16x16xf32>
    %20 = arith.mulf %19, %18 : vector<16x16xf32>
    %21 = arith.addf %17, %20 : vector<16x16xf32>
    %22 = vector.extract_strided_slice %1 {offsets = [0, 2], sizes = [16, 16], strides = [1, 1]} : vector<18x18xf32> to vector<16x16xf32>
    %23 = arith.addf %21, %22 : vector<16x16xf32>
    %24 = vector.extract_strided_slice %1 {offsets = [2, 0], sizes = [16, 16], strides = [1, 1]} : vector<18x18xf32> to vector<16x16xf32>
    %25 = arith.subf %23, %24 : vector<16x16xf32>
    %26 = vector.extract_strided_slice %1 {offsets = [2, 1], sizes = [16, 16], strides = [1, 1]} : vector<18x18xf32> to vector<16x16xf32>
    %cst_4 = arith.constant 2.000000e+00 : f32
    %27 = vector.broadcast %cst_4 : f32 to vector<16x16xf32>
    %28 = arith.mulf %27, %26 : vector<16x16xf32>
    %29 = arith.subf %25, %28 : vector<16x16xf32>
    %30 = vector.extract_strided_slice %1 {offsets = [2, 2], sizes = [16, 16], strides = [1, 1]} : vector<18x18xf32> to vector<16x16xf32>
    %31 = arith.subf %29, %30 : vector<16x16xf32>
    %32 = arith.mulf %16, %16 : vector<16x16xf32>
    %33 = arith.mulf %31, %31 : vector<16x16xf32>
    %34 = arith.addf %32, %33 : vector<16x16xf32>
    %35 = math.sqrt %34 : vector<16x16xf32>
    %c0_5 = arith.constant 0 : index
    %c0_6 = arith.constant 0 : index
    %c0_7 = arith.constant 0 : index
    %36 = vector.load %arg2[%c0_5, %c0_6, %c0_7] : memref<1x18x18xf32, #tpu.memory_space<vmem>>, vector<1x18x18xf32>
    %37 = vector.shape_cast %36 : vector<1x18x18xf32> to vector<18x18xf32>
    %38 = vector.extract_strided_slice %37 {offsets = [0, 0], sizes = [16, 16], strides = [1, 1]} : vector<18x18xf32> to vector<16x16xf32>
    %39 = vector.extract_strided_slice %37 {offsets = [0, 2], sizes = [16, 16], strides = [1, 1]} : vector<18x18xf32> to vector<16x16xf32>
    %40 = arith.subf %38, %39 : vector<16x16xf32>
    %41 = vector.extract_strided_slice %37 {offsets = [1, 0], sizes = [16, 16], strides = [1, 1]} : vector<18x18xf32> to vector<16x16xf32>
    %cst_8 = arith.constant 2.000000e+00 : f32
    %42 = vector.broadcast %cst_8 : f32 to vector<16x16xf32>
    %43 = arith.mulf %42, %41 : vector<16x16xf32>
    %44 = arith.addf %40, %43 : vector<16x16xf32>
    %45 = vector.extract_strided_slice %37 {offsets = [1, 2], sizes = [16, 16], strides = [1, 1]} : vector<18x18xf32> to vector<16x16xf32>
    %cst_9 = arith.constant 2.000000e+00 : f32
    %46 = vector.broadcast %cst_9 : f32 to vector<16x16xf32>
    %47 = arith.mulf %46, %45 : vector<16x16xf32>
    %48 = arith.subf %44, %47 : vector<16x16xf32>
    %49 = vector.extract_strided_slice %37 {offsets = [2, 0], sizes = [16, 16], strides = [1, 1]} : vector<18x18xf32> to vector<16x16xf32>
    %50 = arith.addf %48, %49 : vector<16x16xf32>
    %51 = vector.extract_strided_slice %37 {offsets = [2, 2], sizes = [16, 16], strides = [1, 1]} : vector<18x18xf32> to vector<16x16xf32>
    %52 = arith.subf %50, %51 : vector<16x16xf32>
    %53 = vector.extract_strided_slice %37 {offsets = [0, 0], sizes = [16, 16], strides = [1, 1]} : vector<18x18xf32> to vector<16x16xf32>
    %54 = vector.extract_strided_slice %37 {offsets = [0, 1], sizes = [16, 16], strides = [1, 1]} : vector<18x18xf32> to vector<16x16xf32>
    %cst_10 = arith.constant 2.000000e+00 : f32
    %55 = vector.broadcast %cst_10 : f32 to vector<16x16xf32>
    %56 = arith.mulf %55, %54 : vector<16x16xf32>
    %57 = arith.addf %53, %56 : vector<16x16xf32>
    %58 = vector.extract_strided_slice %37 {offsets = [0, 2], sizes = [16, 16], strides = [1, 1]} : vector<18x18xf32> to vector<16x16xf32>
    %59 = arith.addf %57, %58 : vector<16x16xf32>
    %60 = vector.extract_strided_slice %37 {offsets = [2, 0], sizes = [16, 16], strides = [1, 1]} : vector<18x18xf32> to vector<16x16xf32>
    %61 = arith.subf %59, %60 : vector<16x16xf32>
    %62 = vector.extract_strided_slice %37 {offsets = [2, 1], sizes = [16, 16], strides = [1, 1]} : vector<18x18xf32> to vector<16x16xf32>
    %cst_11 = arith.constant 2.000000e+00 : f32
    %63 = vector.broadcast %cst_11 : f32 to vector<16x16xf32>
    %64 = arith.mulf %63, %62 : vector<16x16xf32>
    %65 = arith.subf %61, %64 : vector<16x16xf32>
    %66 = vector.extract_strided_slice %37 {offsets = [2, 2], sizes = [16, 16], strides = [1, 1]} : vector<18x18xf32> to vector<16x16xf32>
    %67 = arith.subf %65, %66 : vector<16x16xf32>
    %68 = arith.mulf %52, %52 : vector<16x16xf32>
    %69 = arith.mulf %67, %67 : vector<16x16xf32>
    %70 = arith.addf %68, %69 : vector<16x16xf32>
    %71 = math.sqrt %70 : vector<16x16xf32>
    %c0_12 = arith.constant 0 : index
    %c0_13 = arith.constant 0 : index
    %c0_14 = arith.constant 0 : index
    %72 = vector.load %arg3[%c0_12, %c0_13, %c0_14] : memref<1x16x16xf32, #tpu.memory_space<vmem>>, vector<1x16x16xf32>
    %73 = vector.shape_cast %72 : vector<1x16x16xf32> to vector<16x16xf32>
    %74 = vector.shape_cast %35 : vector<16x16xf32> to vector<1x16x16xf32>
    tpu.vector_store %arg3[%c0_12, %c0_13, %c0_14], %74 {strides = array<i32>} : memref<1x16x16xf32, #tpu.memory_space<vmem>>, vector<1x16x16xf32>,
    %c0_15 = arith.constant 0 : index
    %c0_16 = arith.constant 0 : index
    %c0_17 = arith.constant 0 : index
    %75 = vector.load %arg4[%c0_15, %c0_16, %c0_17] : memref<1x16x16xf32, #tpu.memory_space<vmem>>, vector<1x16x16xf32>
    %76 = vector.shape_cast %75 : vector<1x16x16xf32> to vector<16x16xf32>
    %77 = vector.shape_cast %71 : vector<16x16xf32> to vector<1x16x16xf32>
    tpu.vector_store %arg4[%c0_15, %c0_16, %c0_17], %77 {strides = array<i32>} : memref<1x16x16xf32, #tpu.memory_space<vmem>>, vector<1x16x16xf32>,
    %78 = arith.subf %35, %71 : vector<16x16xf32>
    %79 = arith.mulf %78, %78 : vector<16x16xf32>
    %cst_18 = arith.constant dense<0.000000e+00> : vector<16xf32>
    %80 = vector.multi_reduction <add>, %79, %cst_18 [0] : vector<16x16xf32> to vector<16xf32>
    %81 = vector.shape_cast %80 : vector<16xf32> to vector<1x16xf32>
    %c0_19 = arith.constant 0 : index
    %c0_20 = arith.constant 0 : index
    %c0_21 = arith.constant 0 : index
    %82 = vector.load %arg5[%c0_19, %c0_20, %c0_21] : memref<1x1x16xf32, #tpu.memory_space<vmem>>, vector<1x1x16xf32>
    %83 = vector.shape_cast %82 : vector<1x1x16xf32> to vector<1x16xf32>
    %84 = vector.shape_cast %81 : vector<1x16xf32> to vector<1x1x16xf32>
    tpu.vector_store %arg5[%c0_19, %c0_20, %c0_21], %84 {strides = array<i32>} : memref<1x1x16xf32, #tpu.memory_space<vmem>>, vector<1x1x16xf32>,
    return
  }
  func.func @transform_0(%arg0: i32) -> (i32, i32, i32) {
    %c0_i32 = arith.constant 0 : i32
    %c0_i32_0 = arith.constant 0 : i32
    %c0_i32_1 = arith.constant 0 : i32
    return %arg0, %c0_i32, %c0_i32_0 : i32, i32, i32
  }
  func.func @transform_1(%arg0: i32) -> (i32, i32, i32) {
    %c0_i32 = arith.constant 0 : i32
    %c0_i32_0 = arith.constant 0 : i32
    %c0_i32_1 = arith.constant 0 : i32
    return %arg0, %c0_i32, %c0_i32_0 : i32, i32, i32
  }
  func.func @transform_2(%arg0: i32) -> (i32, i32, i32) {
    %c0_i32 = arith.constant 0 : i32
    %c0_i32_0 = arith.constant 0 : i32
    %c0_i32_1 = arith.constant 0 : i32
    return %arg0, %c0_i32, %c0_i32_0 : i32, i32, i32
  }
  func.func @transform_3(%arg0: i32) -> (i32, i32, i32) {
    %c0_i32 = arith.constant 0 : i32
    %c0_i32_0 = arith.constant 0 : i32
    %c0_i32_1 = arith.constant 0 : i32
    return %arg0, %c0_i32, %c0_i32_0 : i32, i32, i32
  }
  func.func @transform_4(%arg0: i32) -> (i32, i32, i32) {
    %c0_i32 = arith.constant 0 : i32
    %c0_i32_0 = arith.constant 0 : i32
    %c0_i32_1 = arith.constant 0 : i32
    return %arg0, %c0_i32, %c0_i32_0 : i32, i32, i32
  }
}

</mosaic_0001>

<llo_original>
// kernel: tpu_custom_call.1
$region0: #{tpu_custom_call.1}
  #allocation0 [shape = 'u32[]', space=smem, size = 0x4, offset = 0x4, fixed_abs, tag = 'smem constant byte address 0x4 - core index']
  #allocation1 [shape = 'u32[72,128]{1,0:T(1,128)}', space=vmem, size = 0x9000, scoped, tag = 'internal scratch']
  %s0 = inlined_call_operand.vmem [shape: f32[2,18,18], index: 0, kind: input, shape index: {}]
  %s1 = inlined_call_operand.vmem [shape: f32[2,18,18], index: 1, kind: input, shape index: {}]
  %s2 = inlined_call_operand.hbm [shape: f32[2,16,16], index: 2, kind: output, shape index: {0}]
  %s3 = inlined_call_operand.hbm [shape: f32[2,16,16], index: 3, kind: output, shape index: {1}]
  %s4 = inlined_call_operand.hbm [shape: f32[2,1,16], index: 4, kind: output, shape index: {2}]
  %5 = xla_tuple %s2, %s3, %s4
  %s6 = sld [smem:[#allocation0]]
  $region57: #{tpu_custom_call.1} parent=0
    _
  %s8 = ssub.s32 1, %s6
  %s9 = scalar_select 0, %s8, %s6
  $region1: #{tpu_custom_call.1} parent=0
    #allocation2 [shape = 'u8[16384]{0}', space=vmem, size = 0x4000, scoped, tag = 'output window, operand 0']
    #allocation3 [shape = 's32[2]{0}', space=sflag, size = 0x8, scoped, tag = 'scoped memory for tpu_custom_call.1']
    #allocation4 [shape = 'u8[16384]{0}', space=vmem, size = 0x4000, scoped, tag = 'output window, operand 1']
    #allocation5 [shape = 's32[2]{0}', space=sflag, size = 0x8, scoped, tag = 'scoped memory for tpu_custom_call.1']
    #allocation6 [shape = 'u8[1024]{0}', space=vmem, size = 0x400, scoped, tag = 'output window, operand 2']
    %10 = vsyncpa [#allocation3], 0
    %s11 = scalar_lea.sflag [#allocation3], 1
    %12 = vsyncpa %s11, 0
    %13 = vsyncpa [#allocation5], 0
    %s14 = scalar_lea.sflag [#allocation5], 1
    %15 = vsyncpa %s14, 0
    loop: start=0, step=1, limit=4
    $region2: #{tpu_custom_call.1} parent=1 // loop_pre_header
      _
    $region3: #{tpu_custom_call.1} parent=1 // loop_header
      %s17 = sphi 0, %s21
      %p18 = scmp.ge.s32.totalorder %s17, 4
      %s27 = sphi 0, %s29
      %s30 = sphi 0, %s27
      %s31 = sphi 0, %s30
      %s47 = sphi 0, %s31
      %s53 = sphi 0, %s55
      %s56 = sphi 0, %s53
      %s57 = sphi 0, %s56
      %s73 = sphi 0, %s57
      %s79 = sphi 0, %s81
      %s82 = sphi 0, %s79
      %s83 = sphi 0, %s82
      %s99 = sphi 0, %s83
      %s105 = sphi 0, %s107
      %s108 = sphi 0, %s105
      %s109 = sphi 0, %s108
      %s125 = sphi 0, %s109
      %s131 = sphi 0, %s133
      %s134 = sphi 0, %s131
      %s135 = sphi 0, %s134
      %s151 = sphi 0, %s135
    $region4: #{tpu_custom_call.1} parent=1 // loop_header_branch
      %20 = sbr.rel (%p18) target = $region8
    $region5: #{tpu_custom_call.1} parent=1 // loop_body
      %s22 = ssub.s32 %s17, 1
      %s23 = ssub.s32 %s17, 2
      %s24 = sadd.s32 %s17, 1
      %s25 = ssub.s32 %s17, %s24
      %p26 = scmp.eq.s32.totalorder %s25, 0
      %s28 = sadd.s32 %s27, 1
      %s29 = scalar_select %p26, %s27, %s28
      %p32 = pneg %p26
      %p33 = scmp.eq.s32.totalorder %s17, 1
      %p34 = por %p32, %p33
      %p35 = scmp.ne.s32.totalorder %s27, %s30
      %p36 = scmp.eq.s32.totalorder %s17, 0
      %p37 = por %p35, %p36
      %p38 = scmp.ne.s32.totalorder %s27, %s30
      %p39 = scmp.eq.s32.totalorder %s22, 1
      %p40 = por %p38, %p39
      %p41 = scmp.ne.s32.totalorder %s30, %s31
      %p42 = scmp.eq.s32.totalorder %s22, 0
      %p43 = por %p41, %p42
      %p44 = scmp.ne.s32.totalorder %s30, %s31
      %p45 = scmp.eq.s32.totalorder %s23, 1
      %p46 = por %p44, %p45
      %p48 = scmp.ne.s32.totalorder %s31, %s47
      %p49 = scmp.eq.s32.totalorder %s23, 0
      %p50 = por %p48, %p49
      %s51 = ssub.s32 %s17, %s24
      %p52 = scmp.eq.s32.totalorder %s51, 0
      %s54 = sadd.s32 %s53, 1
      %s55 = scalar_select %p52, %s53, %s54
      %p58 = pneg %p52
      %p59 = scmp.eq.s32.totalorder %s17, 1
      %p60 = por %p58, %p59
      %p61 = scmp.ne.s32.totalorder %s53, %s56
      %p62 = scmp.eq.s32.totalorder %s17, 0
      %p63 = por %p61, %p62
      %p64 = scmp.ne.s32.totalorder %s53, %s56
      %p65 = scmp.eq.s32.totalorder %s22, 1
      %p66 = por %p64, %p65
      %p67 = scmp.ne.s32.totalorder %s56, %s57
      %p68 = scmp.eq.s32.totalorder %s22, 0
      %p69 = por %p67, %p68
      %p70 = scmp.ne.s32.totalorder %s56, %s57
      %p71 = scmp.eq.s32.totalorder %s23, 1
      %p72 = por %p70, %p71
      %p74 = scmp.ne.s32.totalorder %s57, %s73
      %p75 = scmp.eq.s32.totalorder %s23, 0
      %p76 = por %p74, %p75
      %s77 = ssub.s32 %s17, %s24
      %p78 = scmp.eq.s32.totalorder %s77, 0
      %s80 = sadd.s32 %s79, 1
      %s81 = scalar_select %p78, %s79, %s80
      %p84 = pneg %p78
      %p85 = scmp.eq.s32.totalorder %s17, 1
      %p86 = por %p84, %p85
      %p87 = scmp.ne.s32.totalorder %s79, %s82
      %p88 = scmp.eq.s32.totalorder %s17, 0
      %p89 = por %p87, %p88
      %p90 = scmp.ne.s32.totalorder %s79, %s82
      %p91 = scmp.eq.s32.totalorder %s22, 1
      %p92 = por %p90, %p91
      %p93 = scmp.ne.s32.totalorder %s82, %s83
      %p94 = scmp.eq.s32.totalorder %s22, 0
      %p95 = por %p93, %p94
      %p96 = scmp.ne.s32.totalorder %s82, %s83
      %p97 = scmp.eq.s32.totalorder %s23, 1
      %p98 = por %p96, %p97
      %p100 = scmp.ne.s32.totalorder %s83, %s99
      %p101 = scmp.eq.s32.totalorder %s23, 0
      %p102 = por %p100, %p101
      %s103 = ssub.s32 %s17, %s24
      %p104 = scmp.eq.s32.totalorder %s103, 0
      %s106 = sadd.s32 %s105, 1
      %s107 = scalar_select %p104, %s105, %s106
      %p110 = pneg %p104
      %p111 = scmp.eq.s32.totalorder %s17, 1
      %p112 = por %p110, %p111
      %p113 = scmp.ne.s32.totalorder %s105, %s108
      %p114 = scmp.eq.s32.totalorder %s17, 0
      %p115 = por %p113, %p114
      %p116 = scmp.ne.s32.totalorder %s105, %s108
      %p117 = scmp.eq.s32.totalorder %s22, 1
      %p118 = por %p116, %p117
      %p119 = scmp.ne.s32.totalorder %s108, %s109
      %p120 = scmp.eq.s32.totalorder %s22, 0
      %p121 = por %p119, %p120
      %p122 = scmp.ne.s32.totalorder %s108, %s109
      %p123 = scmp.eq.s32.totalorder %s23, 1
      %p124 = por %p122, %p123
      %p126 = scmp.ne.s32.totalorder %s109, %s125
      %p127 = scmp.eq.s32.totalorder %s23, 0
      %p128 = por %p126, %p127
      %s129 = ssub.s32 %s17, %s24
      %p130 = scmp.eq.s32.totalorder %s129, 0
      %s132 = sadd.s32 %s131, 1
      %s133 = scalar_select %p130, %s131, %s132
      %p136 = pneg %p130
      %p137 = scmp.eq.s32.totalorder %s17, 1
      %p138 = por %p136, %p137
      %p139 = scmp.ne.s32.totalorder %s131, %s134
      %p140 = scmp.eq.s32.totalorder %s17, 0
      %p141 = por %p139, %p140
      %p142 = scmp.ne.s32.totalorder %s131, %s134
      %p143 = scmp.eq.s32.totalorder %s22, 1
      %p144 = por %p142, %p143
      %p145 = scmp.ne.s32.totalorder %s134, %s135
      %p146 = scmp.eq.s32.totalorder %s22, 0
      %p147 = por %p145, %p146
      %p148 = scmp.ne.s32.totalorder %s134, %s135
      %p149 = scmp.eq.s32.totalorder %s23, 1
      %p150 = por %p148, %p149
      %p152 = scmp.ne.s32.totalorder %s135, %s151
      %p153 = scmp.eq.s32.totalorder %s23, 0
      %p154 = por %p152, %p153
      %p155 = scmp.le.s32.totalorder 1, %s17
      %p156 = scmp.lt.s32.totalorder %s17, 3
      %p157 = pnand %p155, %p156
      %p158 = pneg %p157
      // Predicated region
      $region9: #{tpu_custom_call.1} parent=5 // pred_check
        _
      $region10: #{tpu_custom_call.1} parent=5 // pred_check_branch
        %160 = sbr.rel (%p157) target = $region12
      $region11: #{tpu_custom_call.1} parent=5 // pred_region
        %s161 = ssub.s32 %s17, 1
      $region12: #{tpu_custom_call.1} parent=5 // pred_fallthru
        _
      %p162 = scmp.lt.s32.totalorder %s17, 2
      // Predicated region
      $region13: #{tpu_custom_call.1} parent=5 // pred_check
        %p163 = pneg %p162
      $region14: #{tpu_custom_call.1} parent=5 // pred_check_branch
        %165 = sbr.rel (%p163) target = $region16
      $region15: #{tpu_custom_call.1} parent=5 // pred_region
        // Predicated region
        $region17: #{tpu_custom_call.1} parent=15 // pred_check
          %p166 = pneg %p37
        $region18: #{tpu_custom_call.1} parent=15 // pred_check_branch
          %168 = sbr.rel (%p166) target = $region20
        $region19: #{tpu_custom_call.1} parent=15 // pred_region
          %p169 = scmp.lt.s32.totalorder %s17, 1
          %s170 = scalar_select %p169, %s17, 1
          %s171 = smul.addr %s170, 3
          %s172 = smul.addr %s171, 8
          %s173 = scalar_lea.vmem %s0, %s172
        $region20: #{tpu_custom_call.1} parent=15 // pred_fallthru
          _
        // Predicated region
        $region21: #{tpu_custom_call.1} parent=15 // pred_check
          %p174 = pneg %p63
        $region22: #{tpu_custom_call.1} parent=15 // pred_check_branch
          %176 = sbr.rel (%p174) target = $region24
        $region23: #{tpu_custom_call.1} parent=15 // pred_region
          %p177 = scmp.lt.s32.totalorder %s17, 1
          %s178 = scalar_select %p177, %s17, 1
          %s179 = smul.addr %s178, 3
          %s180 = smul.addr %s179, 8
          %s181 = scalar_lea.vmem %s1, %s180
        $region24: #{tpu_custom_call.1} parent=15 // pred_fallthru
          _
      $region16: #{tpu_custom_call.1} parent=5 // pred_fallthru
        _
      %p182 = scmp.le.s32.totalorder 1, %s17
      %p183 = scmp.lt.s32.totalorder %s17, 3
      %p184 = pnand %p182, %p183
      %p185 = pneg %p184
      // Predicated region
      $region25: #{tpu_custom_call.1} parent=5 // pred_check
        _
      $region26: #{tpu_custom_call.1} parent=5 // pred_check_branch
        %187 = sbr.rel (%p184) target = $region28
      $region27: #{tpu_custom_call.1} parent=5 // pred_region
        %s188 = ssub.s32 %s17, 1
        %p189 = scmp.lt.s32.totalorder %s22, 1
        %s190 = scalar_select %p189, %s22, 1
        %s191 = smul.addr %s190, 3
        %s192 = smul.addr %s191, 8
        %s193 = scalar_lea.vmem %s0, %s192
        %p194 = pneg %p43
        %p195 = pneg %p40
        %p196 = scmp.lt.s32.totalorder %s22, 1
        %s197 = scalar_select %p196, %s22, 1
        %s198 = smul.addr %s197, 3
        %s199 = smul.addr %s198, 8
        %s200 = scalar_lea.vmem %s1, %s199
        %p201 = pneg %p69
        %p202 = pneg %p66
        %p203 = pneg %p95
        %p204 = pneg %p92
        %s205 = sand.u32 %s82, 1
        %s206 = scalar_lea.sflag [#allocation3], %s205
        %s207 = sand.u32 %s82, 1
        %s208 = smul.addr %s207, 16
        %s209 = scalar_lea.vmem [#allocation2], %s208
        %p210 = pneg %p121
        %p211 = pneg %p118
        %s212 = sand.u32 %s22, 1
        %s213 = scalar_lea.sflag [#allocation5], %s212
        %s214 = sand.u32 %s108, 1
        %s215 = smul.addr %s214, 16
        %s216 = scalar_lea.vmem [#allocation4], %s215
        %p217 = pneg %p147
        %p218 = pneg %p144
        %s219 = sand.u32 %s22, 1
        %s220 = scalar_lea.sflag [#allocation5], %s219
        %s221 = sand.u32 %s134, 1
        %s222 = scalar_lea.vmem [#allocation6], %s221
        %p223 = scmp.lt.s32.totalorder %s22, 1
        %s224 = scalar_select %p223, %s22, 1
        %s225 = smul.addr %s224, 3
        %s226 = smul.addr %s225, 8
        %s227 = scalar_lea.vmem %s0, %s226
        %p228 = scmp.lt.s32.totalorder %s22, 1
        %s229 = scalar_select %p228, %s22, 1
        %s230 = smul.addr %s229, 3
        %s231 = smul.addr %s230, 8
        %s232 = scalar_lea.vmem %s1, %s231
        %v233 = vld [vmem:[%s227] sm:$0xff]
        %v234 = vld [vmem:[%s227 + $0x8] sm:$0xff]
        %v235 = vld [vmem:[%s227 + $0x10] sm:$0x3]
        %238 = vrot.lane.b32.xlu0 %v233, 126
        %v239 = vpop.permute.xlu0 %238
        %240 = vrot.lane.b32.xlu0 %v234, 126
        %v241 = vpop.permute.xlu0 %240
        %v244 = vsub.f32 %v233, %v239
        %v245 = vsub.f32 %v234, %v241
        %v246 = vmul.f32 %v233, 2.0
        %v247 = vmul.f32 %v234, 2.0
        %v248 = vmul.f32 %v235, 2.0
        %vm252 = vcmask 1046528
        %v253 = vrot.slane %v246, 1
        %v254 = vrot.slane %v247, 1
        %v255 = vsel %vm252, %v253, %v254
        %v256 = vrot.slane %v248, 1
        %v257 = vsel %vm252, %v254, %v256
        %v260 = vadd.f32 %v244, %v255
        %v261 = vadd.f32 %v245, %v257
        %262 = vrot.lane.b32.xlu0 %v255, 126
        %v263 = vpop.permute.xlu0 %262
        %264 = vrot.lane.b32.xlu0 %v257, 126
        %v265 = vpop.permute.xlu0 %264
        %v268 = vsub.f32 %v260, %v263
        %v269 = vsub.f32 %v261, %v265
        %vm271 = vcmask 1045504
        %v272 = vrot.slane %v233, 2
        %v273 = vrot.slane %v234, 2
        %v274 = vsel %vm271, %v272, %v273
        %v275 = vrot.slane %v235, 2
        %v276 = vsel %vm271, %v273, %v275
        %v279 = vadd.f32 %v268, %v274
        %v280 = vadd.f32 %v269, %v276
        %281 = vrot.lane.b32.xlu0 %v274, 126
        %v282 = vpop.permute.xlu0 %281
        %283 = vrot.lane.b32.xlu0 %v276, 126
        %v284 = vpop.permute.xlu0 %283
        %v287 = vsub.f32 %v279, %v282
        %v288 = vsub.f32 %v280, %v284
        %289 = vrot.lane.b32.xlu0 %v246, 127
        %v290 = vpop.permute.xlu0 %289
        %291 = vrot.lane.b32.xlu0 %v247, 127
        %v292 = vpop.permute.xlu0 %291
        %v295 = vadd.f32 %v233, %v290
        %v296 = vadd.f32 %v234, %v292
        %v297 = vadd.f32 %v295, %v239
        %v298 = vadd.f32 %v296, %v241
        %v299 = vsub.f32 %v297, %v274
        %v300 = vsub.f32 %v298, %v276
        %v301 = vrot.slane %v246, 2
        %v302 = vrot.slane %v247, 2
        %v303 = vsel %vm271, %v301, %v302
        %v304 = vrot.slane %v248, 2
        %v305 = vsel %vm271, %v302, %v304
        %306 = vrot.lane.b32.xlu0 %v303, 127
        %v307 = vpop.permute.xlu0 %306
        %308 = vrot.lane.b32.xlu0 %v305, 127
        %v309 = vpop.permute.xlu0 %308
        %v312 = vsub.f32 %v299, %v307
        %v313 = vsub.f32 %v300, %v309
        %v314 = vsub.f32 %v312, %v282
        %v315 = vsub.f32 %v313, %v284
        %v316 = vmul.f32 %v287, %v287
        %v317 = vmul.f32 %v288, %v288
        %v318 = vmul.f32 %v314, %v314
        %v319 = vmul.f32 %v315, %v315
        %v320 = vadd.f32 %v316, %v318
        %v321 = vadd.f32 %v317, %v319
        %v322 = vrsqrt.pop %v320
        %v323 = vmul.f32 %v322, %v320
        %v324 = vmul.f32 %v323, %v322
        %v325 = vmul.f32 0.5, %v324
        %v326 = vsub.f32 1.5, %v325
        %v327 = vmul.f32 %v322, %v326
        %v328 = vmul.f32 %v320, %v327
        %vm329 = vcmp.eq.f32.partialorder %v320, inf
        %v330 = vsel %vm329, %v320, %v328
        %vm331 = vcmp.eq.f32.partialorder %v320, 0.0
        %v332 = vand.u32 %v320, 2147483648
        %v333 = vsel %vm331, %v332, %v330
        %v334 = vrsqrt.pop %v321
        %v335 = vmul.f32 %v334, %v321
        %v336 = vmul.f32 %v335, %v334
        %v337 = vmul.f32 0.5, %v336
        %v338 = vsub.f32 1.5, %v337
        %v339 = vmul.f32 %v334, %v338
        %v340 = vmul.f32 %v321, %v339
        %vm341 = vcmp.eq.f32.partialorder %v321, inf
        %v342 = vsel %vm341, %v321, %v340
        %vm343 = vcmp.eq.f32.partialorder %v321, 0.0
        %v344 = vand.u32 %v321, 2147483648
        %v345 = vsel %vm343, %v344, %v342
        %v346 = vld [vmem:[%s232] sm:$0xff]
        %v347 = vld [vmem:[%s232 + $0x8] sm:$0xff]
        %v348 = vld [vmem:[%s232 + $0x10] sm:$0x3]
        %351 = vrot.lane.b32.xlu0 %v346, 126
        %v352 = vpop.permute.xlu0 %351
        %353 = vrot.lane.b32.xlu0 %v347, 126
        %v354 = vpop.permute.xlu0 %353
        %v357 = vsub.f32 %v346, %v352
        %v358 = vsub.f32 %v347, %v354
        %v359 = vmul.f32 %v346, 2.0
        %v360 = vmul.f32 %v347, 2.0
        %v361 = vmul.f32 %v348, 2.0
        %v365 = vrot.slane %v359, 1
        %v366 = vrot.slane %v360, 1
        %v367 = vsel %vm252, %v365, %v366
        %v368 = vrot.slane %v361, 1
        %v369 = vsel %vm252, %v366, %v368
        %v372 = vadd.f32 %v357, %v367
        %v373 = vadd.f32 %v358, %v369
        %374 = vrot.lane.b32.xlu0 %v367, 126
        %v375 = vpop.permute.xlu0 %374
        %376 = vrot.lane.b32.xlu0 %v369, 126
        %v377 = vpop.permute.xlu0 %376
        %v380 = vsub.f32 %v372, %v375
        %v381 = vsub.f32 %v373, %v377
        %v383 = vrot.slane %v346, 2
        %v384 = vrot.slane %v347, 2
        %v385 = vsel %vm271, %v383, %v384
        %v386 = vrot.slane %v348, 2
        %v387 = vsel %vm271, %v384, %v386
        %v390 = vadd.f32 %v380, %v385
        %v391 = vadd.f32 %v381, %v387
        %392 = vrot.lane.b32.xlu0 %v385, 126
        %v393 = vpop.permute.xlu0 %392
        %394 = vrot.lane.b32.xlu0 %v387, 126
        %v395 = vpop.permute.xlu0 %394
        %v398 = vsub.f32 %v390, %v393
        %v399 = vsub.f32 %v391, %v395
        %400 = vrot.lane.b32.xlu0 %v359, 127
        %v401 = vpop.permute.xlu0 %400
        %402 = vrot.lane.b32.xlu0 %v360, 127
        %v403 = vpop.permute.xlu0 %402
        %v406 = vadd.f32 %v346, %v401
        %v407 = vadd.f32 %v347, %v403
        %v408 = vadd.f32 %v406, %v352
        %v409 = vadd.f32 %v407, %v354
        %v410 = vsub.f32 %v408, %v385
        %v411 = vsub.f32 %v409, %v387
        %v412 = vrot.slane %v359, 2
        %v413 = vrot.slane %v360, 2
        %v414 = vsel %vm271, %v412, %v413
        %v415 = vrot.slane %v361, 2
        %v416 = vsel %vm271, %v413, %v415
        %417 = vrot.lane.b32.xlu0 %v414, 127
        %v418 = vpop.permute.xlu0 %417
        %419 = vrot.lane.b32.xlu0 %v416, 127
        %v420 = vpop.permute.xlu0 %419
        %v423 = vsub.f32 %v410, %v418
        %v424 = vsub.f32 %v411, %v420
        %v425 = vsub.f32 %v423, %v393
        %v426 = vsub.f32 %v424, %v395
        %v427 = vmul.f32 %v398, %v398
        %v428 = vmul.f32 %v399, %v399
        %v429 = vmul.f32 %v425, %v425
        %v430 = vmul.f32 %v426, %v426
        %v431 = vadd.f32 %v427, %v429
        %v432 = vadd.f32 %v428, %v430
        %v433 = vrsqrt.pop %v431
        %v434 = vmul.f32 %v433, %v431
        %v435 = vmul.f32 %v434, %v433
        %v436 = vmul.f32 0.5, %v435
        %v437 = vsub.f32 1.5, %v436
        %v438 = vmul.f32 %v433, %v437
        %v439 = vmul.f32 %v431, %v438
        %vm440 = vcmp.eq.f32.partialorder %v431, inf
        %v441 = vsel %vm440, %v431, %v439
        %vm442 = vcmp.eq.f32.partialorder %v431, 0.0
        %v443 = vand.u32 %v431, 2147483648
        %v444 = vsel %vm442, %v443, %v441
        %v445 = vrsqrt.pop %v432
        %v446 = vmul.f32 %v445, %v432
        %v447 = vmul.f32 %v446, %v445
        %v448 = vmul.f32 0.5, %v447
        %v449 = vsub.f32 1.5, %v448
        %v450 = vmul.f32 %v445, %v449
        %v451 = vmul.f32 %v432, %v450
        %vm452 = vcmp.eq.f32.partialorder %v432, inf
        %v453 = vsel %vm452, %v432, %v451
        %vm454 = vcmp.eq.f32.partialorder %v432, 0.0
        %v455 = vand.u32 %v432, 2147483648
        %v456 = vsel %vm454, %v455, %v453
        %vm457 = vcmask 130048
        %458 = vst.msk [vmem:[%s209] sm:$0xff] %vm457, %v333
        %459 = vst.msk [vmem:[%s209 + $0x8] sm:$0xff] %vm457, %v345
        %460 = vst.msk [vmem:[%s216] sm:$0xff] %vm457, %v444
        %461 = vst.msk [vmem:[%s216 + $0x8] sm:$0xff] %vm457, %v456
        %v462 = vsub.f32 %v333, %v444
        %v463 = vsub.f32 %v345, %v456
        %v464 = vmul.f32 %v462, %v462
        %v465 = vmul.f32 %v463, %v463
        %v466 = vsel %vm457, %v464, 0.0
        %v467 = vsel %vm457, %v465, 0.0
        %v468 = vadd.f32 %v466, %v467
        %v469 = vrot.slane %v468, 4
        %v470 = vadd.f32 %v468, %v469
        %v471 = vrot.slane %v470, 2
        %v472 = vadd.f32 %v470, %v471
        %v473 = vrot.slane %v472, 1
        %v474 = vadd.f32 %v472, %v473
        %vm475 = vcmask 122880
        %476 = vst.msk [vmem:[%s222] sm:$0x1] %vm475, %v474
        %s477 = sand.u32 %s82, 1
        %s478 = scalar_lea.sflag [#allocation3], %s477
        %s479 = sand.u32 %s82, 1
        %s480 = smul.addr %s479, 16
        %s481 = scalar_lea.vmem [#allocation2], %s480
        %s482 = sand.u32 %s22, 1
        %s483 = scalar_lea.sflag [#allocation5], %s482
        %s484 = sand.u32 %s108, 1
        %s485 = smul.addr %s484, 16
        %s486 = scalar_lea.vmem [#allocation4], %s485
        %s487 = sand.u32 %s22, 1
        %s488 = scalar_lea.sflag [#allocation5], %s487
        %s489 = sand.u32 %s134, 1
        %s490 = scalar_lea.vmem [#allocation6], %s489
        // Predicated region
        $region29: #{tpu_custom_call.1} parent=27 // pred_check
          %p491 = pneg %p92
        $region30: #{tpu_custom_call.1} parent=27 // pred_check_branch
          %493 = sbr.rel (%p491) target = $region32
        $region31: #{tpu_custom_call.1} parent=27 // pred_region
          %495 = vsyncadd %s478, 0
          %s496 = smul.addr %s22, 2
          %s497 = smul.addr %s496, 8
          %s498 = scalar_lea.hbm %s2, %s497
          %s499 = sshll.u32 %s481, 4
          %s500 = int_to_ptr.vmem [resolvable:$true] %s499
          %s501 = sshll.u32 %s498, 4
          %s502 = int_to_ptr.hbm [resolvable:$true] %s501
          %507 = dma.vmem_to_hbm [thread:$0]  %s500, 256, %s502, %s478, 128, 128, 8
        $region32: #{tpu_custom_call.1} parent=27 // pred_fallthru
          _
        // Predicated region
        $region33: #{tpu_custom_call.1} parent=27 // pred_check
          %p508 = pneg %p118
        $region34: #{tpu_custom_call.1} parent=27 // pred_check_branch
          %510 = sbr.rel (%p508) target = $region36
        $region35: #{tpu_custom_call.1} parent=27 // pred_region
          %512 = vsyncadd %s483, 0
          %s513 = smul.addr %s22, 2
          %s514 = smul.addr %s513, 8
          %s515 = scalar_lea.hbm %s3, %s514
          %s516 = sshll.u32 %s486, 4
          %s517 = int_to_ptr.vmem [resolvable:$true] %s516
          %s518 = sshll.u32 %s515, 4
          %s519 = int_to_ptr.hbm [resolvable:$true] %s518
          %524 = dma.vmem_to_hbm [thread:$0]  %s517, 256, %s519, %s483, 128, 128, 8
        $region36: #{tpu_custom_call.1} parent=27 // pred_fallthru
          _
        // Predicated region
        $region37: #{tpu_custom_call.1} parent=27 // pred_check
          %p525 = pneg %p144
        $region38: #{tpu_custom_call.1} parent=27 // pred_check_branch
          %527 = sbr.rel (%p525) target = $region40
        $region39: #{tpu_custom_call.1} parent=27 // pred_region
          %529 = vsyncadd %s488, 0
          %s530 = scalar_lea.hbm %s4, %s22
          %s532 = sshll.u32 %s490, 4
          %s533 = int_to_ptr.vmem [resolvable:$true] %s532
          %s534 = sshll.u32 %s530, 4
          %s535 = int_to_ptr.hbm [resolvable:$true] %s534
          %537 = dma.vmem_to_hbm [thread:$0]  %s533, 16, %s535, %s488
        $region40: #{tpu_custom_call.1} parent=27 // pred_fallthru
          _
      $region28: #{tpu_custom_call.1} parent=5 // pred_fallthru
        _
      %p538 = scmp.le.s32.totalorder 2, %s17
      // Predicated region
      $region41: #{tpu_custom_call.1} parent=5 // pred_check
        %p539 = pneg %p538
      $region42: #{tpu_custom_call.1} parent=5 // pred_check_branch
        %541 = sbr.rel (%p539) target = $region44
      $region43: #{tpu_custom_call.1} parent=5 // pred_region
        %s542 = ssub.s32 %s17, 2
        // Predicated region
        $region45: #{tpu_custom_call.1} parent=43 // pred_check
          %p543 = pneg %p98
        $region46: #{tpu_custom_call.1} parent=43 // pred_check_branch
          %545 = sbr.rel (%p543) target = $region48
        $region47: #{tpu_custom_call.1} parent=43 // pred_region
          %s546 = sand.u32 %s83, 1
          %s547 = scalar_lea.sflag [#allocation3], %s546
          %s548 = sand.u32 %s83, 1
          %s549 = smul.addr %s548, 16
          %s550 = scalar_lea.vmem [#allocation2], %s549
          %552 = dma.done %s547, 256
        $region48: #{tpu_custom_call.1} parent=43 // pred_fallthru
          _
        // Predicated region
        $region49: #{tpu_custom_call.1} parent=43 // pred_check
          %p553 = pneg %p124
        $region50: #{tpu_custom_call.1} parent=43 // pred_check_branch
          %555 = sbr.rel (%p553) target = $region52
        $region51: #{tpu_custom_call.1} parent=43 // pred_region
          %s556 = sand.u32 %s23, 1
          %s557 = scalar_lea.sflag [#allocation5], %s556
          %s558 = sand.u32 %s109, 1
          %s559 = smul.addr %s558, 16
          %s560 = scalar_lea.vmem [#allocation4], %s559
          %562 = dma.done %s557, 256
        $region52: #{tpu_custom_call.1} parent=43 // pred_fallthru
          _
        // Predicated region
        $region53: #{tpu_custom_call.1} parent=43 // pred_check
          %p563 = pneg %p150
        $region54: #{tpu_custom_call.1} parent=43 // pred_check_branch
          %565 = sbr.rel (%p563) target = $region56
        $region55: #{tpu_custom_call.1} parent=43 // pred_region
          %s566 = sand.u32 %s23, 1
          %s567 = scalar_lea.sflag [#allocation5], %s566
          %s568 = sand.u32 %s135, 1
          %s569 = scalar_lea.vmem [#allocation6], %s568
          %571 = dma.done %s567, 16
        $region56: #{tpu_custom_call.1} parent=43 // pred_fallthru
          _
      $region44: #{tpu_custom_call.1} parent=5 // pred_fallthru
        _
    $region6: #{tpu_custom_call.1} parent=1 // loop_footer
      %s21 = sadd.s32 1, %s17
    $region7: #{tpu_custom_call.1} parent=1 // loop_footer_branch
      %16 = sbr.rel target = $region3
    $region8: #{tpu_custom_call.1} parent=1 // loop_exit
      _
    %572 = vsyncpa [#allocation3], 1
    %s573 = scalar_lea.sflag [#allocation3], 1
    %574 = vsyncpa %s573, 1
    %575 = vsyncpa [#allocation5], 1
    %s576 = scalar_lea.sflag [#allocation5], 1
    %577 = vsyncpa %s576, 1

</llo_original>
